<compile_context>
chip_gen: v7x
topology: tpu7x:2x2x1
jax: 0.10.0
libtpu: 0.0.40
codegen_flags: <defaults>
</compile_context>

<pallas_src>
import math
from functools import partial

import jax
import jax.numpy as jnp
from jax import lax
from jax.experimental import pallas as pl
from jax.experimental.pallas import tpu as pltpu  # noqa: F401  (TPU backend)


def _self_attn_kernel(nhead, head_dim, n_batch, eps,
                      x_ref, pos_ref, w_ref, vecs_ref, out_ref):
    # x_ref / pos_ref / out_ref: (LN, E)   with LN = L * N (rows ordered l-major)
    # w_ref:    (E, 4E)  = [Wq^T*scale | Wk^T | Wv^T | Wo^T]
    # vecs_ref: (4, 3E)  = [bq*scale|bk|bv ; bo|pad ; gamma|pad ; beta|pad]
    E = nhead * head_dim
    LN = x_ref.shape[0]

    x = x_ref[...]                       # (LN, E)
    qk_in = x + pos_ref[...]             # (LN, E)

    w = w_ref[...]                       # (E, 4E), one lane-dense tile
    wqkv = w[:, :3 * E]                  # (E, 3E)
    wo = w[:, 3 * E:]                    # (E, E)

    vecs = vecs_ref[...]                 # (4, 3E)
    bqkv = vecs[0:1, :]                  # (1, 3E)
    bo = vecs[1:2, :E]                   # (1, E)
    gamma = vecs[2:3, :E]                # (1, E)
    beta = vecs[3:4, :E]                 # (1, E)

    # --- Fused Q|K|V in-projection: one MXU push/pop -------------------------
    stacked = jnp.concatenate([qk_in, x], axis=0)                      # (2LN, E)
    proj = jnp.dot(stacked, wqkv,
                   preferred_element_type=jnp.float32) + bqkv          # (2LN, 3E)
    q = proj[:LN, :E]                    # already scaled by 1/sqrt(Dh)
    k = proj[:LN, E:2 * E]
    v = proj[LN:, 2 * E:]

    # --- Static same-batch mask (row r <-> batch r % N) -----------------------
    rows = lax.broadcasted_iota(jnp.int32, (LN, LN), 0)
    cols = lax.broadcasted_iota(jnp.int32, (LN, LN), 1)
    neg_mask = jnp.where((rows % n_batch) == (cols % n_batch),
                         jnp.float32(0.0), jnp.float32(-1e30))          # (LN, LN)

    # --- Per-head attention (small static head count -> unrolled) ------------
    heads = []
    for h in range(nhead):
        c0 = h * head_dim
        qh = q[:, c0:c0 + head_dim]      # (LN, Dh)
        kh = k[:, c0:c0 + head_dim]      # (LN, Dh)
        vh = v[:, c0:c0 + head_dim]      # (LN, Dh)

        # q k^T with the transpose absorbed by the MXU dimension numbers.
        s = lax.dot_general(qh, kh, (((1,), (1,)), ((), ())),
                            preferred_element_type=jnp.float32)         # (LN, LN)
        s = s + neg_mask                 # mask BEFORE max/exp: cross-batch -> 0
        s = s - jnp.max(s, axis=-1, keepdims=True)
        p = jnp.exp(s)                   # unnormalized probs
        o = jnp.dot(p, vh, preferred_element_type=jnp.float32)          # (LN, Dh)
        # Exact softmax denominator folded into the small (LN, Dh) result.
        o = o * (1.0 / jnp.sum(p, axis=-1, keepdims=True))
        heads.append(o)

    # --- Single fused out-projection ------------------------------------------
    o_all = jnp.concatenate(heads, axis=-1)                             # (LN, E)
    attn = jnp.dot(o_all, wo, preferred_element_type=jnp.float32)       # (LN, E)

    # --- Residual + out-proj bias + LayerNorm ---------------------------------
    y = x + attn + bo
    mean = jnp.mean(y, axis=-1, keepdims=True)
    var = jnp.mean(jnp.square(y - mean), axis=-1, keepdims=True)
    yn = (y - mean) * lax.rsqrt(var + eps)
    out = yn * gamma + beta

    out_ref[...] = out.astype(out_ref.dtype)


def prepare_params(params, *, nhead):
    """One-time host-side fusion of the layer parameters (hoisted out of the
    per-call path).  Returns two packed arrays consumed by the kernel."""
    E = params["wq"].shape[0]
    head_dim = E // nhead
    scale = 1.0 / math.sqrt(head_dim)

    # (E, 3E) = [Wq^T*scale | Wk^T | Wv^T], then append Wo^T -> (E, 4E) slab.
    wqkv = jnp.concatenate(
        [params["wq"].T * scale, params["wk"].T, params["wv"].T], axis=1)
    w = jnp.concatenate([wqkv, params["wo"].T], axis=1)                  # (E, 4E)

    bqkv = jnp.concatenate([params["bq"] * scale, params["bk"], params["bv"]])

    def _pad(vec):
        return jnp.pad(vec, (0, 3 * E - vec.shape[0]))

    vecs = jnp.stack([bqkv,
                      _pad(params["bo"]),
                      _pad(params["ln_w"]),
                      _pad(params["ln_b"])], axis=0)                     # (4, 3E)
    return {"w": w, "vecs": vecs, "nhead": nhead, "head_dim": head_dim}


def self_attention_layer(tgt, query_pos, fused, *, eps=1e-5):
    """tgt, query_pos: (L, N, E) float32 (PyTorch MHA layout). Returns (L, N, E)."""
    L, N, E = tgt.shape
    nhead, head_dim = fused["nhead"], fused["head_dim"]
    assert nhead * head_dim == E

    # Contiguous, zero-cost flattening of the batch into sublanes.
    x = tgt.reshape(L * N, E)
    pos = query_pos.reshape(L * N, E)

    out = pl.pallas_call(
        partial(_self_attn_kernel, nhead, head_dim, N, eps),
        out_shape=jax.ShapeDtypeStruct((L * N, E), tgt.dtype),
        # No grid / no BlockSpecs: single kernel step, whole arrays resident in
        # VMEM (4 input DMAs + 1 output DMA total).
    )(x, pos, fused["w"], fused["vecs"])

    return out.reshape(L, N, E)


def _xavier_uniform(key, shape):
    fan_out, fan_in = shape
    bound = math.sqrt(6.0 / (fan_in + fan_out))
    return jax.random.uniform(key, shape, jnp.float32, -bound, bound)


def init_params(key, d_model):
    # nn.MultiheadAttention: in_proj_weight (3E, E) xavier_uniform, out_proj
    # xavier_uniform; biases made nonzero here for a stronger test.
    ks = jax.random.split(key, 8)
    in_proj_w = _xavier_uniform(ks[0], (3 * d_model, d_model))
    return {
        "wq": in_proj_w[0 * d_model:1 * d_model],
        "wk": in_proj_w[1 * d_model:2 * d_model],
        "wv": in_proj_w[2 * d_model:3 * d_model],
        "bq": 0.01 * jax.random.normal(ks[1], (d_model,), jnp.float32),
        "bk": 0.01 * jax.random.normal(ks[2], (d_model,), jnp.float32),
        "bv": 0.01 * jax.random.normal(ks[3], (d_model,), jnp.float32),
        "wo": _xavier_uniform(ks[4], (d_model, d_model)),
        "bo": 0.01 * jax.random.normal(ks[5], (d_model,), jnp.float32),
        "ln_w": 1.0 + 0.01 * jax.random.normal(ks[6], (d_model,), jnp.float32),
        "ln_b": 0.01 * jax.random.normal(ks[7], (d_model,), jnp.float32),
    }


def reference(tgt, query_pos, params, *, nhead, eps=1e-5):
    """Pure-JAX reference matching torch.nn.MultiheadAttention + residual + LayerNorm."""
    L, N, E = tgt.shape
    Dh = E // nhead
    qk_in = tgt + query_pos
    q = qk_in @ params["wq"].T + params["bq"]
    k = qk_in @ params["wk"].T + params["bk"]
    v = tgt @ params["wv"].T + params["bv"]

    def split(x):  # (L, N, E) -> (N, H, L, Dh)
        return jnp.transpose(x.reshape(L, N, nhead, Dh), (1, 2, 0, 3))

    qh, kh, vh = split(q), split(k), split(v)
    s = jnp.einsum("nhld,nhmd->nhlm", qh, kh) / math.sqrt(Dh)
    p = jax.nn.softmax(s, axis=-1)
    o = jnp.einsum("nhlm,nhmd->nhld", p, vh)                 # (N, H, L, Dh)
    o = jnp.transpose(o, (2, 0, 1, 3)).reshape(L, N, E)
    o = o @ params["wo"].T + params["bo"]
    y = tgt + o
    mean = jnp.mean(y, axis=-1, keepdims=True)
    var = jnp.mean(jnp.square(y - mean), axis=-1, keepdims=True)
    return (y - mean) * lax.rsqrt(var + eps) * params["ln_w"] + params["ln_b"]


if __name__ == "__main__":
    # TODO(synk): tgt_mask / tgt_key_padding_mask (both default None) are not supported;
    #             dropout (p=0.0 in seg_decorder) is a no-op and omitted.
    L, N, E, H = 8, 2, 32, 4   # seq (queries), batch, d_model, nhead
    key = jax.random.PRNGKey(0)
    kp, kt, kq = jax.random.split(key, 3)
    params = init_params(kp, E)
    tgt = jax.random.normal(kt, (L, N, E), jnp.float32)
    query_pos = jax.random.normal(kq, (L, N, E), jnp.float32)

    fused = prepare_params(params, nhead=H)          # one-time weight fusion
    out = self_attention_layer(tgt, query_pos, fused)
    out = jax.block_until_ready(out)

    ref = reference(tgt, query_pos, params, nhead=H)
    assert out.shape == (L, N, E)
    # Exact softmax denominator now -> only f32 accumulation-order differences.
    assert jnp.allclose(out, ref, atol=1e-3, rtol=1e-3), "mismatch vs reference"
    print("KERNEL_OK")
</pallas_src>

<mosaic_0001>
module attributes {stable_mosaic.version = 11 : i64} {
  func.func @_self_attn_kernel(%arg0: memref<16x32xf32, #tpu.memory_space<vmem>>, %arg1: memref<16x32xf32, #tpu.memory_space<vmem>>, %arg2: memref<32x128xf32, #tpu.memory_space<vmem>>, %arg3: memref<4x96xf32, #tpu.memory_space<vmem>>, %arg4: memref<16x32xf32, #tpu.memory_space<vmem>>) attributes {dimension_semantics = [], scalar_prefetch = 0 : i64, scratch_operands = 0 : i64, tpu.core_type = #tpu.core_type<tc>} {
    %c0 = arith.constant 0 : index
    %c0_0 = arith.constant 0 : index
    %0 = vector.load %arg0[%c0, %c0_0] : memref<16x32xf32, #tpu.memory_space<vmem>>, vector<16x32xf32>
    %c0_1 = arith.constant 0 : index
    %c0_2 = arith.constant 0 : index
    %1 = vector.load %arg1[%c0_1, %c0_2] : memref<16x32xf32, #tpu.memory_space<vmem>>, vector<16x32xf32>
    %2 = arith.addf %0, %1 : vector<16x32xf32>
    %c0_3 = arith.constant 0 : index
    %c0_4 = arith.constant 0 : index
    %3 = vector.load %arg2[%c0_3, %c0_4] : memref<32x128xf32, #tpu.memory_space<vmem>>, vector<32x128xf32>
    %4 = vector.extract_strided_slice %3 {offsets = [0, 0], sizes = [32, 96], strides = [1, 1]} : vector<32x128xf32> to vector<32x96xf32>
    %5 = vector.extract_strided_slice %3 {offsets = [0, 96], sizes = [32, 32], strides = [1, 1]} : vector<32x128xf32> to vector<32x32xf32>
    %c0_5 = arith.constant 0 : index
    %c0_6 = arith.constant 0 : index
    %6 = vector.load %arg3[%c0_5, %c0_6] : memref<4x96xf32, #tpu.memory_space<vmem>>, vector<4x96xf32>
    %7 = vector.extract_strided_slice %6 {offsets = [0, 0], sizes = [1, 96], strides = [1, 1]} : vector<4x96xf32> to vector<1x96xf32>
    %8 = vector.extract_strided_slice %6 {offsets = [1, 0], sizes = [1, 32], strides = [1, 1]} : vector<4x96xf32> to vector<1x32xf32>
    %9 = vector.extract_strided_slice %6 {offsets = [2, 0], sizes = [1, 32], strides = [1, 1]} : vector<4x96xf32> to vector<1x32xf32>
    %10 = vector.extract_strided_slice %6 {offsets = [3, 0], sizes = [1, 32], strides = [1, 1]} : vector<4x96xf32> to vector<1x32xf32>
    %11 = tpu.concatenate %2, %0 in 0 : vector<16x32xf32>, vector<16x32xf32> -> vector<32x32xf32>
    %cst = arith.constant dense<0.000000e+00> : vector<32x96xf32>
    %12 = tpu.matmul %11, %4, %cst {dimension_numbers = #tpu.dot_dimension_numbers<[1], [0], [0], [1], [0, 0, 1, 1], [], []>} : vector<32x32xf32>, vector<32x96xf32>, vector<32x96xf32> -> vector<32x96xf32>
    %13 = vector.broadcast %7 : vector<1x96xf32> to vector<32x96xf32>
    %14 = arith.addf %12, %13 : vector<32x96xf32>
    %15 = vector.extract_strided_slice %14 {offsets = [0, 0], sizes = [16, 32], strides = [1, 1]} : vector<32x96xf32> to vector<16x32xf32>
    %16 = vector.extract_strided_slice %14 {offsets = [0, 32], sizes = [16, 32], strides = [1, 1]} : vector<32x96xf32> to vector<16x32xf32>
    %17 = vector.extract_strided_slice %14 {offsets = [16, 64], sizes = [16, 32], strides = [1, 1]} : vector<32x96xf32> to vector<16x32xf32>
    %18 = tpu.iota {dimensions = array<i32: 0>} : vector<16x16xi32>
    %19 = tpu.iota {dimensions = array<i32: 1>} : vector<16x16xi32>
    %c2_i32 = arith.constant 2 : i32
    %c0_i32 = arith.constant 0 : i32
    %20 = arith.cmpi eq, %c2_i32, %c0_i32 : i32
    %c1_i32 = arith.constant 1 : i32
    %21 = arith.select %20, %c1_i32, %c2_i32 : i32
    %22 = vector.broadcast %21 : i32 to vector<16x16xi32>
    %23 = arith.remsi %18, %22 : vector<16x16xi32>
    %c0_i32_7 = arith.constant 0 : i32
    %24 = vector.broadcast %c0_i32_7 : i32 to vector<16x16xi32>
    %25 = arith.cmpi ne, %23, %24 : vector<16x16xi32>
    %c0_i32_8 = arith.constant 0 : i32
    %26 = vector.broadcast %c0_i32_8 : i32 to vector<16x16xi32>
    %27 = arith.cmpi slt, %23, %26 : vector<16x16xi32>
    %c0_i32_9 = arith.constant 0 : i32
    %28 = arith.cmpi slt, %21, %c0_i32_9 : i32
    %29 = vector.broadcast %28 : i1 to vector<16x16xi1>
    %30 = vector.broadcast %29 : vector<16x16xi1> to vector<16x16xi1>
    %31 = arith.xori %27, %30 : vector<16x16xi1>
    %32 = arith.andi %31, %25 : vector<16x16xi1>
    %33 = vector.broadcast %21 : i32 to vector<16x16xi32>
    %34 = arith.addi %23, %33 : vector<16x16xi32>
    %35 = arith.select %32, %34, %23 : vector<16x16xi1>, vector<16x16xi32>
    %c2_i32_10 = arith.constant 2 : i32
    %c0_i32_11 = arith.constant 0 : i32
    %36 = arith.cmpi eq, %c2_i32_10, %c0_i32_11 : i32
    %c1_i32_12 = arith.constant 1 : i32
    %37 = arith.select %36, %c1_i32_12, %c2_i32_10 : i32
    %38 = vector.broadcast %37 : i32 to vector<16x16xi32>
    %39 = arith.remsi %19, %38 : vector<16x16xi32>
    %c0_i32_13 = arith.constant 0 : i32
    %40 = vector.broadcast %c0_i32_13 : i32 to vector<16x16xi32>
    %41 = arith.cmpi ne, %39, %40 : vector<16x16xi32>
    %c0_i32_14 = arith.constant 0 : i32
    %42 = vector.broadcast %c0_i32_14 : i32 to vector<16x16xi32>
    %43 = arith.cmpi slt, %39, %42 : vector<16x16xi32>
    %c0_i32_15 = arith.constant 0 : i32
    %44 = arith.cmpi slt, %37, %c0_i32_15 : i32
    %45 = vector.broadcast %44 : i1 to vector<16x16xi1>
    %46 = vector.broadcast %45 : vector<16x16xi1> to vector<16x16xi1>
    %47 = arith.xori %43, %46 : vector<16x16xi1>
    %48 = arith.andi %47, %41 : vector<16x16xi1>
    %49 = vector.broadcast %37 : i32 to vector<16x16xi32>
    %50 = arith.addi %39, %49 : vector<16x16xi32>
    %51 = arith.select %48, %50, %39 : vector<16x16xi1>, vector<16x16xi32>
    %52 = arith.cmpi eq, %35, %51 : vector<16x16xi32>
    %cst_16 = arith.constant 0.000000e+00 : f32
    %cst_17 = arith.constant -1.000000e+30 : f32
    %53 = vector.broadcast %cst_16 : f32 to vector<16x16xf32>
    %54 = vector.broadcast %cst_17 : f32 to vector<16x16xf32>
    %55 = arith.select %52, %53, %54 : vector<16x16xi1>, vector<16x16xf32>
    %56 = vector.extract_strided_slice %15 {offsets = [0, 0], sizes = [16, 8], strides = [1, 1]} : vector<16x32xf32> to vector<16x8xf32>
    %57 = vector.extract_strided_slice %16 {offsets = [0, 0], sizes = [16, 8], strides = [1, 1]} : vector<16x32xf32> to vector<16x8xf32>
    %58 = vector.extract_strided_slice %17 {offsets = [0, 0], sizes = [16, 8], strides = [1, 1]} : vector<16x32xf32> to vector<16x8xf32>
    %cst_18 = arith.constant dense<0.000000e+00> : vector<16x16xf32>
    %59 = tpu.matmul %56, %57, %cst_18 {dimension_numbers = #tpu.dot_dimension_numbers<[1], [1], [0], [0], [0, 0, 1, 0], [], []>} : vector<16x8xf32>, vector<16x8xf32>, vector<16x16xf32> -> vector<16x16xf32>
    %60 = arith.addf %59, %55 : vector<16x16xf32>
    %cst_19 = arith.constant dense<0xFF800000> : vector<16xf32>
    %61 = vector.multi_reduction <maximumf>, %60, %cst_19 [1] : vector<16x16xf32> to vector<16xf32>
    %62 = vector.shape_cast %61 : vector<16xf32> to vector<16x1xf32>
    %63 = vector.broadcast %62 : vector<16x1xf32> to vector<16x16xf32>
    %64 = arith.subf %60, %63 : vector<16x16xf32>
    %65 = math.exp %64 : vector<16x16xf32>
    %cst_20 = arith.constant dense<0.000000e+00> : vector<16x8xf32>
    %66 = tpu.matmul %65, %58, %cst_20 {dimension_numbers = #tpu.dot_dimension_numbers<[1], [0], [0], [1], [0, 0, 1, 1], [], []>} : vector<16x16xf32>, vector<16x8xf32>, vector<16x8xf32> -> vector<16x8xf32>
    %cst_21 = arith.constant dense<0.000000e+00> : vector<16xf32>
    %67 = vector.multi_reduction <add>, %65, %cst_21 [1] : vector<16x16xf32> to vector<16xf32>
    %68 = vector.shape_cast %67 : vector<16xf32> to vector<16x1xf32>
    %cst_22 = arith.constant 1.000000e+00 : f32
    %69 = vector.broadcast %cst_22 : f32 to vector<16x1xf32>
    %70 = arith.divf %69, %68 : vector<16x1xf32>
    %71 = vector.broadcast %70 : vector<16x1xf32> to vector<16x8xf32>
    %72 = arith.mulf %66, %71 : vector<16x8xf32>
    %73 = vector.extract_strided_slice %15 {offsets = [0, 8], sizes = [16, 8], strides = [1, 1]} : vector<16x32xf32> to vector<16x8xf32>
    %74 = vector.extract_strided_slice %16 {offsets = [0, 8], sizes = [16, 8], strides = [1, 1]} : vector<16x32xf32> to vector<16x8xf32>
    %75 = vector.extract_strided_slice %17 {offsets = [0, 8], sizes = [16, 8], strides = [1, 1]} : vector<16x32xf32> to vector<16x8xf32>
    %cst_23 = arith.constant dense<0.000000e+00> : vector<16x16xf32>
    %76 = tpu.matmul %73, %74, %cst_23 {dimension_numbers = #tpu.dot_dimension_numbers<[1], [1], [0], [0], [0, 0, 1, 0], [], []>} : vector<16x8xf32>, vector<16x8xf32>, vector<16x16xf32> -> vector<16x16xf32>
    %77 = arith.addf %76, %55 : vector<16x16xf32>
    %cst_24 = arith.constant dense<0xFF800000> : vector<16xf32>
    %78 = vector.multi_reduction <maximumf>, %77, %cst_24 [1] : vector<16x16xf32> to vector<16xf32>
    %79 = vector.shape_cast %78 : vector<16xf32> to vector<16x1xf32>
    %80 = vector.broadcast %79 : vector<16x1xf32> to vector<16x16xf32>
    %81 = arith.subf %77, %80 : vector<16x16xf32>
    %82 = math.exp %81 : vector<16x16xf32>
    %cst_25 = arith.constant dense<0.000000e+00> : vector<16x8xf32>
    %83 = tpu.matmul %82, %75, %cst_25 {dimension_numbers = #tpu.dot_dimension_numbers<[1], [0], [0], [1], [0, 0, 1, 1], [], []>} : vector<16x16xf32>, vector<16x8xf32>, vector<16x8xf32> -> vector<16x8xf32>
    %cst_26 = arith.constant dense<0.000000e+00> : vector<16xf32>
    %84 = vector.multi_reduction <add>, %82, %cst_26 [1] : vector<16x16xf32> to vector<16xf32>
    %85 = vector.shape_cast %84 : vector<16xf32> to vector<16x1xf32>
    %cst_27 = arith.constant 1.000000e+00 : f32
    %86 = vector.broadcast %cst_27 : f32 to vector<16x1xf32>
    %87 = arith.divf %86, %85 : vector<16x1xf32>
    %88 = vector.broadcast %87 : vector<16x1xf32> to vector<16x8xf32>
    %89 = arith.mulf %83, %88 : vector<16x8xf32>
    %90 = vector.extract_strided_slice %15 {offsets = [0, 16], sizes = [16, 8], strides = [1, 1]} : vector<16x32xf32> to vector<16x8xf32>
    %91 = vector.extract_strided_slice %16 {offsets = [0, 16], sizes = [16, 8], strides = [1, 1]} : vector<16x32xf32> to vector<16x8xf32>
    %92 = vector.extract_strided_slice %17 {offsets = [0, 16], sizes = [16, 8], strides = [1, 1]} : vector<16x32xf32> to vector<16x8xf32>
    %cst_28 = arith.constant dense<0.000000e+00> : vector<16x16xf32>
    %93 = tpu.matmul %90, %91, %cst_28 {dimension_numbers = #tpu.dot_dimension_numbers<[1], [1], [0], [0], [0, 0, 1, 0], [], []>} : vector<16x8xf32>, vector<16x8xf32>, vector<16x16xf32> -> vector<16x16xf32>
    %94 = arith.addf %93, %55 : vector<16x16xf32>
    %cst_29 = arith.constant dense<0xFF800000> : vector<16xf32>
    %95 = vector.multi_reduction <maximumf>, %94, %cst_29 [1] : vector<16x16xf32> to vector<16xf32>
    %96 = vector.shape_cast %95 : vector<16xf32> to vector<16x1xf32>
    %97 = vector.broadcast %96 : vector<16x1xf32> to vector<16x16xf32>
    %98 = arith.subf %94, %97 : vector<16x16xf32>
    %99 = math.exp %98 : vector<16x16xf32>
    %cst_30 = arith.constant dense<0.000000e+00> : vector<16x8xf32>
    %100 = tpu.matmul %99, %92, %cst_30 {dimension_numbers = #tpu.dot_dimension_numbers<[1], [0], [0], [1], [0, 0, 1, 1], [], []>} : vector<16x16xf32>, vector<16x8xf32>, vector<16x8xf32> -> vector<16x8xf32>
    %cst_31 = arith.constant dense<0.000000e+00> : vector<16xf32>
    %101 = vector.multi_reduction <add>, %99, %cst_31 [1] : vector<16x16xf32> to vector<16xf32>
    %102 = vector.shape_cast %101 : vector<16xf32> to vector<16x1xf32>
    %cst_32 = arith.constant 1.000000e+00 : f32
    %103 = vector.broadcast %cst_32 : f32 to vector<16x1xf32>
    %104 = arith.divf %103, %102 : vector<16x1xf32>
    %105 = vector.broadcast %104 : vector<16x1xf32> to vector<16x8xf32>
    %106 = arith.mulf %100, %105 : vector<16x8xf32>
    %107 = vector.extract_strided_slice %15 {offsets = [0, 24], sizes = [16, 8], strides = [1, 1]} : vector<16x32xf32> to vector<16x8xf32>
    %108 = vector.extract_strided_slice %16 {offsets = [0, 24], sizes = [16, 8], strides = [1, 1]} : vector<16x32xf32> to vector<16x8xf32>
    %109 = vector.extract_strided_slice %17 {offsets = [0, 24], sizes = [16, 8], strides = [1, 1]} : vector<16x32xf32> to vector<16x8xf32>
    %cst_33 = arith.constant dense<0.000000e+00> : vector<16x16xf32>
    %110 = tpu.matmul %107, %108, %cst_33 {dimension_numbers = #tpu.dot_dimension_numbers<[1], [1], [0], [0], [0, 0, 1, 0], [], []>} : vector<16x8xf32>, vector<16x8xf32>, vector<16x16xf32> -> vector<16x16xf32>
    %111 = arith.addf %110, %55 : vector<16x16xf32>
    %cst_34 = arith.constant dense<0xFF800000> : vector<16xf32>
    %112 = vector.multi_reduction <maximumf>, %111, %cst_34 [1] : vector<16x16xf32> to vector<16xf32>
    %113 = vector.shape_cast %112 : vector<16xf32> to vector<16x1xf32>
    %114 = vector.broadcast %113 : vector<16x1xf32> to vector<16x16xf32>
    %115 = arith.subf %111, %114 : vector<16x16xf32>
    %116 = math.exp %115 : vector<16x16xf32>
    %cst_35 = arith.constant dense<0.000000e+00> : vector<16x8xf32>
    %117 = tpu.matmul %116, %109, %cst_35 {dimension_numbers = #tpu.dot_dimension_numbers<[1], [0], [0], [1], [0, 0, 1, 1], [], []>} : vector<16x16xf32>, vector<16x8xf32>, vector<16x8xf32> -> vector<16x8xf32>
    %cst_36 = arith.constant dense<0.000000e+00> : vector<16xf32>
    %118 = vector.multi_reduction <add>, %116, %cst_36 [1] : vector<16x16xf32> to vector<16xf32>
    %119 = vector.shape_cast %118 : vector<16xf32> to vector<16x1xf32>
    %cst_37 = arith.constant 1.000000e+00 : f32
    %120 = vector.broadcast %cst_37 : f32 to vector<16x1xf32>
    %121 = arith.divf %120, %119 : vector<16x1xf32>
    %122 = vector.broadcast %121 : vector<16x1xf32> to vector<16x8xf32>
    %123 = arith.mulf %117, %122 : vector<16x8xf32>
    %124 = tpu.concatenate %72, %89, %106, %123 in 1 : vector<16x8xf32>, vector<16x8xf32>, vector<16x8xf32>, vector<16x8xf32> -> vector<16x32xf32>
    %cst_38 = arith.constant dense<0.000000e+00> : vector<16x32xf32>
    %125 = tpu.matmul %124, %5, %cst_38 {dimension_numbers = #tpu.dot_dimension_numbers<[1], [0], [0], [1], [0, 0, 1, 1], [], []>} : vector<16x32xf32>, vector<32x32xf32>, vector<16x32xf32> -> vector<16x32xf32>
    %126 = arith.addf %0, %125 : vector<16x32xf32>
    %127 = vector.broadcast %8 : vector<1x32xf32> to vector<16x32xf32>
    %128 = arith.addf %126, %127 : vector<16x32xf32>
    %cst_39 = arith.constant dense<0.000000e+00> : vector<16xf32>
    %129 = vector.multi_reduction <add>, %128, %cst_39 [1] : vector<16x32xf32> to vector<16xf32>
    %130 = vector.shape_cast %129 : vector<16xf32> to vector<16x1xf32>
    %cst_40 = arith.constant 3.200000e+01 : f32
    %131 = vector.broadcast %cst_40 : f32 to vector<16x1xf32>
    %132 = arith.divf %130, %131 : vector<16x1xf32>
    %133 = vector.broadcast %132 : vector<16x1xf32> to vector<16x32xf32>
    %134 = arith.subf %128, %133 : vector<16x32xf32>
    %135 = arith.mulf %134, %134 : vector<16x32xf32>
    %cst_41 = arith.constant dense<0.000000e+00> : vector<16xf32>
    %136 = vector.multi_reduction <add>, %135, %cst_41 [1] : vector<16x32xf32> to vector<16xf32>
    %137 = vector.shape_cast %136 : vector<16xf32> to vector<16x1xf32>
    %cst_42 = arith.constant 3.200000e+01 : f32
    %138 = vector.broadcast %cst_42 : f32 to vector<16x1xf32>
    %139 = arith.divf %137, %138 : vector<16x1xf32>
    %140 = vector.broadcast %132 : vector<16x1xf32> to vector<16x32xf32>
    %141 = arith.subf %128, %140 : vector<16x32xf32>
    %cst_43 = arith.constant 9.99999974E-6 : f32
    %142 = vector.broadcast %cst_43 : f32 to vector<16x1xf32>
    %143 = arith.addf %139, %142 : vector<16x1xf32>
    %144 = math.rsqrt %143 : vector<16x1xf32>
    %145 = vector.broadcast %144 : vector<16x1xf32> to vector<16x32xf32>
    %146 = arith.mulf %141, %145 : vector<16x32xf32>
    %147 = vector.broadcast %9 : vector<1x32xf32> to vector<16x32xf32>
    %148 = arith.mulf %146, %147 : vector<16x32xf32>
    %149 = vector.broadcast %10 : vector<1x32xf32> to vector<16x32xf32>
    %150 = arith.addf %148, %149 : vector<16x32xf32>
    %c0_44 = arith.constant 0 : index
    %c0_45 = arith.constant 0 : index
    %151 = vector.load %arg4[%c0_44, %c0_45] : memref<16x32xf32, #tpu.memory_space<vmem>>, vector<16x32xf32>
    tpu.vector_store %arg4[%c0_44, %c0_45], %150 {strides = array<i32>} : memref<16x32xf32, #tpu.memory_space<vmem>>, vector<16x32xf32>,
    return
  }
}

</mosaic_0001>

<llo_original>
// kernel: tpu_custom_call.1
$region0: #{tpu_custom_call.1}
  #allocation0 [shape = 'u32[]', space=smem, size = 0x4, offset = 0x4, fixed_abs, tag = 'smem constant byte address 0x4 - core index']
  #allocation1 [shape = 'u32[144,128]{1,0:T(1,128)}', space=vmem, size = 0x12000, scoped, tag = 'internal scratch']
  %s0 = inlined_call_operand.hbm [shape: f32[16,32], index: 0, kind: input, shape index: {}]
  %s1 = inlined_call_operand.hbm [shape: f32[16,32], index: 1, kind: input, shape index: {}]
  %s2 = inlined_call_operand.hbm [shape: f32[32,128], index: 2, kind: input, shape index: {}]
  %s3 = inlined_call_operand.vmem [shape: f32[4,96], index: 3, kind: input, shape index: {}]
  %s4 = inlined_call_operand.hbm [shape: f32[16,32], index: 4, kind: output, shape index: {}]
  %s5 = sld [smem:[#allocation0]]
  $region38: #{tpu_custom_call.1} parent=0
    _
  %s7 = ssub.s32 1, %s5
  %s8 = scalar_select 0, %s7, %s5
  $region1: #{tpu_custom_call.1} parent=0
    #allocation2 [shape = 'u8[8192]{0}', space=vmem, size = 0x2000, scoped, tag = 'input window, operand 0, single buffered']
    #allocation3 [shape = 's32[1]{0}', space=sflag, size = 0x4, scoped, tag = 'scoped memory for tpu_custom_call.1']
    #allocation4 [shape = 's32[1]{0}', space=sflag, size = 0x4, scoped, tag = 'scoped memory for tpu_custom_call.1']
    #allocation5 [shape = 'u8[8192]{0}', space=vmem, size = 0x2000, scoped, tag = 'input window, operand 1, single buffered']
    #allocation6 [shape = 's32[1]{0}', space=sflag, size = 0x4, scoped, tag = 'scoped memory for tpu_custom_call.1']
    #allocation7 [shape = 'u8[16384]{0}', space=vmem, size = 0x4000, scoped, tag = 'input window, operand 2, single buffered']
    #allocation8 [shape = 'u8[8192]{0}', space=vmem, size = 0x2000, scoped, tag = 'output window, operand 0, single buffered']
    %9 = vsyncpa [#allocation3], 0
    %10 = vsyncpa [#allocation6], 0
    %11 = vsyncpa [#allocation4], 0
    // Predicated region
    $region2: #{tpu_custom_call.1} parent=1 // pred_check
      _
    $region3: #{tpu_custom_call.1} parent=1 // pred_check_branch
      %13 = sbr.rel (0) target = $region5
    $region4: #{tpu_custom_call.1} parent=1 // pred_region
      %s15 = ssub.s32 256, 256
      %16 = vsyncadd [#allocation3], %s15
      %s17 = sshll.u32 [#allocation2], 4
      %s18 = int_to_ptr.vmem [resolvable:$true] %s17
      %23 = dma.hbm_to_vmem [thread:$0]  %s0, 256, %s18, [#allocation3], 128, 128, 8
    $region5: #{tpu_custom_call.1} parent=1 // pred_fallthru
      _
    // Predicated region
    $region6: #{tpu_custom_call.1} parent=1 // pred_check
      _
    $region7: #{tpu_custom_call.1} parent=1 // pred_check_branch
      %25 = sbr.rel (0) target = $region9
    $region8: #{tpu_custom_call.1} parent=1 // pred_region
      %s27 = ssub.s32 256, 256
      %28 = vsyncadd [#allocation6], %s27
      %s29 = sshll.u32 [#allocation5], 4
      %s30 = int_to_ptr.vmem [resolvable:$true] %s29
      %35 = dma.hbm_to_vmem [thread:$0]  %s1, 256, %s30, [#allocation6], 128, 128, 8
    $region9: #{tpu_custom_call.1} parent=1 // pred_fallthru
      _
    // Predicated region
    $region10: #{tpu_custom_call.1} parent=1 // pred_check
      _
    $region11: #{tpu_custom_call.1} parent=1 // pred_check_branch
      %37 = sbr.rel (0) target = $region13
    $region12: #{tpu_custom_call.1} parent=1 // pred_region
      %s39 = ssub.s32 512, 512
      %40 = vsyncadd [#allocation6], %s39
      %s41 = sshll.u32 [#allocation7], 4
      %s42 = int_to_ptr.vmem [resolvable:$true] %s41
      %47 = dma.hbm_to_vmem [thread:$0]  %s2, 512, %s42, [#allocation6], 128, 128, 8
    $region13: #{tpu_custom_call.1} parent=1 // pred_fallthru
      _
    // Predicated region
    $region14: #{tpu_custom_call.1} parent=1 // pred_check
      _
    $region15: #{tpu_custom_call.1} parent=1 // pred_check_branch
      %49 = sbr.rel (0) target = $region17
    $region16: #{tpu_custom_call.1} parent=1 // pred_region
      _
    $region17: #{tpu_custom_call.1} parent=1 // pred_fallthru
      _
    // Predicated region
    $region18: #{tpu_custom_call.1} parent=1 // pred_check
      _
    $region19: #{tpu_custom_call.1} parent=1 // pred_check_branch
      %51 = sbr.rel (0) target = $region21
    $region20: #{tpu_custom_call.1} parent=1 // pred_region
      %52 = dma.done [#allocation3], 256
    $region21: #{tpu_custom_call.1} parent=1 // pred_fallthru
      _
    // Predicated region
    $region22: #{tpu_custom_call.1} parent=1 // pred_check
      _
    $region23: #{tpu_custom_call.1} parent=1 // pred_check_branch
      %54 = sbr.rel (0) target = $region25
    $region24: #{tpu_custom_call.1} parent=1 // pred_region
      %55 = dma.done [#allocation6], 256
    $region25: #{tpu_custom_call.1} parent=1 // pred_fallthru
      _
    // Predicated region
    $region26: #{tpu_custom_call.1} parent=1 // pred_check
      _
    $region27: #{tpu_custom_call.1} parent=1 // pred_check_branch
      %57 = sbr.rel (0) target = $region29
    $region28: #{tpu_custom_call.1} parent=1 // pred_region
      %58 = dma.done [#allocation6], 512
    $region29: #{tpu_custom_call.1} parent=1 // pred_fallthru
      _
    %v59 = vld [vmem:[#allocation2] sm:$0xff]
    %v60 = vld [vmem:[#allocation2 + $0x8] sm:$0xff]
    %v61 = vld [vmem:[#allocation5] sm:$0xff]
    %v62 = vld [vmem:[#allocation5 + $0x8] sm:$0xff]
    %v63 = vadd.f32 %v59, %v61
    %v64 = vadd.f32 %v60, %v62
    %v65 = vld [vmem:[#allocation7] sm:$0xff]
    %v66 = vld [vmem:[#allocation7 + $0x8] sm:$0xff]
    %v67 = vld [vmem:[#allocation7 + $0x10] sm:$0xff]
    %v68 = vld [vmem:[#allocation7 + $0x18] sm:$0xff]
    %v69 = vld [vmem:[%s3] sm:$0xf]
    %v70 = vlaneseq
    %v71 = vshrl.u32 %v70, 7
    %v72 = vsub.s32 0, %v71
    %v73 = vrot.slane %v69, %v72
    %vm74 = vcmask 261120
    %v76 = vsel %vm74, %v63, 0
    %v79 = vsel %vm74, %v64, 0
    %v82 = vsel %vm74, %v59, 0
    %v85 = vsel %vm74, %v60, 0
    %87 = vmatprep.subr.mxu0 0.0
    %88 = vmatpush1.msra.mxu0 %v65
    %89 = vmatprep.subr.mxu0 0.0
    %90 = vmatpush1.msra.mxu0 %v66
    %91 = vmatprep.subr.mxu0 0.0
    %92 = vmatpush1.msra.mxu0 %v67
    %93 = vmatprep.subr.mxu0 0.0
    %94 = vmatpush1.msra.mxu0 %v68
    %95 = vmatprep.subr.mxu0 0.0
    %96 = vmatpush1.msra.mxu0 0.0
    %97 = vmatprep.subr.mxu0 0.0
    %98 = vmatpush1.msra.mxu0 0.0
    %99 = vmatprep.subr.mxu0 0.0
    %100 = vmatpush1.msra.mxu0 0.0
    %101 = vmatprep.subr.mxu0 0.0
    %102 = vmatpush1.msra.mxu0 0.0
    %103 = vmatprep.subr.mxu0 0.0
    %104 = vmatpush1.msra.mxu0 0.0
    %105 = vmatprep.subr.mxu0 0.0
    %106 = vmatpush1.msra.mxu0 0.0
    %107 = vmatprep.subr.mxu0 0.0
    %108 = vmatpush1.msra.mxu0 0.0
    %109 = vmatprep.subr.mxu0 0.0
    %110 = vmatpush1.msra.mxu0 0.0
    %111 = vmatprep.subr.mxu0 0.0
    %112 = vmatpush1.msra.mxu0 0.0
    %113 = vmatprep.subr.mxu0 0.0
    %114 = vmatpush1.msra.mxu0 0.0
    %115 = vmatprep.subr.mxu0 0.0
    %116 = vmatpush1.msra.mxu0 0.0
    %117 = vmatprep.subr.mxu0 0.0
    %118 = vmatpush1.msra.mxu0 0.0
    %119 = vmatprep.subr.mxu0 0.0
    %120 = vmatpush1.msra.mxu0 0.0
    %121 = vmatprep.subr.mxu0 0.0
    %122 = vmatpush1.msra.mxu0 0.0
    %123 = vmatprep.subr.mxu0 0.0
    %124 = vmatpush1.msra.mxu0 0.0
    %125 = vmatprep.subr.mxu0 0.0
    %126 = vmatpush1.msra.mxu0 0.0
    %127 = vmatprep.subr.mxu0 0.0
    %128 = vmatpush1.msra.mxu0 0.0
    %129 = vmatprep.subr.mxu0 0.0
    %130 = vmatpush1.msra.mxu0 0.0
    %131 = vmatprep.subr.mxu0 0.0
    %132 = vmatpush1.msra.mxu0 0.0
    %133 = vmatprep.subr.mxu0 0.0
    %134 = vmatpush1.msra.mxu0 0.0
    %135 = vmatprep.subr.mxu0 0.0
    %136 = vmatpush1.msra.mxu0 0.0
    %137 = vmatprep.subr.mxu0 0.0
    %138 = vmatpush1.msra.mxu0 0.0
    %139 = vmatprep.subr.mxu0 0.0
    %140 = vmatpush1.msra.mxu0 0.0
    %141 = vmatprep.subr.mxu0 0.0
    %142 = vmatpush1.msra.mxu0 0.0
    %143 = vmatprep.subr.mxu0 0.0
    %144 = vmatpush1.msra.mxu0 0.0
    %145 = vmatprep.subr.mxu0 0.0
    %146 = vmatpush1.msra.mxu0 0.0
    %147 = vmatprep.subr.mxu0 0.0
    %148 = vmatpush1.msra.mxu0 0.0
    %149 = vmatprep.subr.mxu0 0.0
    %150 = vmatpush1.msra.mxu0 0.0
    %151 = vmatprep.mubr.f32.mxu0 0.0
    %152 = vmatmul.mubr.f32.gmra.mrb[0].mxu0 %v76
    %v153 = vpop.f32.mrb[0].mxu0
    %v154 = vadd.f32 %v73, %v153
    %v155 = vpop.f32.mrb[0].mxu0
    %156 = vmatprep.mubr.f32.mxu0 0.0
    %157 = vmatmul.mubr.f32.gmra.mrb[0].mxu0 %v79
    %v158 = vpop.f32.mrb[0].mxu0
    %v159 = vadd.f32 %v73, %v158
    %v160 = vpop.f32.mrb[0].mxu0
    %161 = vmatprep.mubr.f32.mxu0 0.0
    %162 = vmatmul.mubr.f32.gmra.mrb[0].mxu0 %v82
    %v163 = vpop.f32.mrb[0].mxu0
    %v164 = vadd.f32 %v73, %v163
    %v165 = vpop.f32.mrb[0].mxu0
    %166 = vmatprep.mubr.f32.mxu0 0.0
    %167 = vmatmul.mubr.f32.gmra.mrb[0].mxu0 %v85
    %v168 = vpop.f32.mrb[0].mxu0
    %v169 = vadd.f32 %v73, %v168
    %v170 = vpop.f32.mrb[0].mxu0
    %171 = vdwg.mxu0
    %v172 = vlaneseq
    %v173 = vshrl.u32 %v172, 7
    %v174 = vadd.s32 %v173, 8
    %v175 = vlaneseq
    %v176 = vand.u32 %v175, 127
    %vm177 = vcmp.lt.s32.totalorder %v173, 0
    %v178 = vsub.s32 0, %v173
    %v179 = vsel %vm177, %v178, %v173
    %v180 = vshrl.u32 %v179, 1
    %v181 = vand.u32 %v179, 1
    %v182 = vsub.s32 0, %v181
    %v183 = vsel %vm177, %v182, %v181
    %vm184 = vcmp.lt.s32.totalorder %v174, 0
    %v185 = vsub.s32 0, %v174
    %v186 = vsel %vm184, %v185, %v174
    %v187 = vshrl.u32 %v186, 1
    %v188 = vand.u32 %v186, 1
    %v189 = vsub.s32 0, %v188
    %v190 = vsel %vm184, %v189, %v188
    %vm191 = vcmp.ne.s32.totalorder %v183, 0
    %vm192 = vcmp.ne.s32.totalorder %v190, 0
    %vm193 = vcmp.lt.s32.totalorder %v183, 0
    %vm194 = vcmp.lt.s32.totalorder %v190, 0
    %vm195 = vmand %vm193, %vm191
    %vm196 = vmand %vm194, %vm192
    %v197 = vadd.s32 %v183, 2
    %v198 = vadd.s32 %v190, 2
    %v199 = vsel %vm195, %v197, %v183
    %v200 = vsel %vm196, %v198, %v190
    %vm201 = vcmp.lt.s32.totalorder %v176, 0
    %v202 = vsub.s32 0, %v176
    %v203 = vsel %vm201, %v202, %v176
    %v204 = vshrl.u32 %v203, 1
    %v205 = vand.u32 %v203, 1
    %v206 = vsub.s32 0, %v205
    %v207 = vsel %vm201, %v206, %v205
    %vm208 = vcmp.ne.s32.totalorder %v207, 0
    %vm209 = vcmp.lt.s32.totalorder %v207, 0
    %vm210 = vmand %vm209, %vm208
    %v211 = vadd.s32 %v207, 2
    %v212 = vsel %vm210, %v211, %v207
    %vm213 = vcmp.eq.s32.totalorder %v199, %v212
    %vm214 = vcmp.eq.s32.totalorder %v200, %v212
    %v215 = vsel %vm213, 0.0, -1e+30
    %v216 = vsel %vm214, 0.0, -1e+30
    %219 = vrot.lane.b32.xlu0 %v154, 96
    %v220 = vpop.permute.xlu0 %219
    %221 = vrot.lane.b32.xlu0 %v159, 96
    %v222 = vpop.permute.xlu0 %221
    %vm223 = vcmask 64512
    %v224 = vsel %vm223, %v154, 0
    %v226 = vsel %vm223, %v159, 0
    %v228 = vsel %vm223, %v220, 0
    %v230 = vsel %vm223, %v222, 0
    %232 = vmatprep.subr.mxu0 0.0
    %233 = vmatpush1.xpose.msra.mxu0 %v228
    %234 = vmatprep.subr.mxu0 0.0
    %235 = vmatpush1.xpose.msra.mxu0 %v230
    %236 = vmatprep.subr.mxu0 0.0
    %237 = vmatpush1.xpose.msra.mxu0 0.0
    %238 = vmatprep.subr.mxu0 0.0
    %239 = vmatpush1.xpose.msra.mxu0 0.0
    %240 = vmatprep.subr.mxu0 0.0
    %241 = vmatpush1.xpose.msra.mxu0 0.0
    %242 = vmatprep.subr.mxu0 0.0
    %243 = vmatpush1.xpose.msra.mxu0 0.0
    %244 = vmatprep.subr.mxu0 0.0
    %245 = vmatpush1.xpose.msra.mxu0 0.0
    %246 = vmatprep.subr.mxu0 0.0
    %247 = vmatpush1.xpose.msra.mxu0 0.0
    %248 = vmatprep.subr.mxu0 0.0
    %249 = vmatpush1.xpose.msra.mxu0 0.0
    %250 = vmatprep.subr.mxu0 0.0
    %251 = vmatpush1.xpose.msra.mxu0 0.0
    %252 = vmatprep.subr.mxu0 0.0
    %253 = vmatpush1.xpose.msra.mxu0 0.0
    %254 = vmatprep.subr.mxu0 0.0
    %255 = vmatpush1.xpose.msra.mxu0 0.0
    %256 = vmatprep.subr.mxu0 0.0
    %257 = vmatpush1.xpose.msra.mxu0 0.0
    %258 = vmatprep.subr.mxu0 0.0
    %259 = vmatpush1.xpose.msra.mxu0 0.0
    %260 = vmatprep.subr.mxu0 0.0
    %261 = vmatpush1.xpose.msra.mxu0 0.0
    %262 = vmatprep.subr.mxu0 0.0
    %263 = vmatpush1.xpose.msra.mxu0 0.0
    %264 = vmatprep.subr.mxu0 0.0
    %265 = vmatpush1.xpose.msra.mxu0 0.0
    %266 = vmatprep.subr.mxu0 0.0
    %267 = vmatpush1.xpose.msra.mxu0 0.0
    %268 = vmatprep.subr.mxu0 0.0
    %269 = vmatpush1.xpose.msra.mxu0 0.0
    %270 = vmatprep.subr.mxu0 0.0
    %271 = vmatpush1.xpose.msra.mxu0 0.0
    %272 = vmatprep.subr.mxu0 0.0
    %273 = vmatpush1.xpose.msra.mxu0 0.0
    %274 = vmatprep.subr.mxu0 0.0
    %275 = vmatpush1.xpose.msra.mxu0 0.0
    %276 = vmatprep.subr.mxu0 0.0
    %277 = vmatpush1.xpose.msra.mxu0 0.0
    %278 = vmatprep.subr.mxu0 0.0
    %279 = vmatpush1.xpose.msra.mxu0 0.0
    %280 = vmatprep.subr.mxu0 0.0
    %281 = vmatpush1.xpose.msra.mxu0 0.0
    %282 = vmatprep.subr.mxu0 0.0
    %283 = vmatpush1.xpose.msra.mxu0 0.0
    %284 = vmatprep.subr.mxu0 0.0
    %285 = vmatpush1.xpose.msra.mxu0 0.0
    %286 = vmatprep.subr.mxu0 0.0
    %287 = vmatpush1.xpose.msra.mxu0 0.0
    %288 = vmatprep.subr.mxu0 0.0
    %289 = vmatpush1.xpose.msra.mxu0 0.0
    %290 = vmatprep.subr.mxu0 0.0
    %291 = vmatpush1.xpose.msra.mxu0 0.0
    %292 = vmatprep.subr.mxu0 0.0
    %293 = vmatpush1.xpose.msra.mxu0 0.0
    %294 = vmatprep.subr.mxu0 0.0
    %295 = vmatpush1.xpose.msra.mxu0 0.0
    %296 = vmatprep.mubr.f32.mxu0 0.0
    %297 = vmatmul.mubr.f32.gmra.mrb[0].mxu0 %v224
    %v298 = vpop.f32.mrb[0].mxu0
    %v299 = vadd.f32 %v215, %v298
    %v300 = vpop.f32.mrb[0].mxu0
    %301 = vmatprep.mubr.f32.mxu0 0.0
    %302 = vmatmul.mubr.f32.gmra.mrb[0].mxu0 %v226
    %v303 = vpop.f32.mrb[0].mxu0
    %v304 = vadd.f32 %v216, %v303
    %v305 = vpop.f32.mrb[0].mxu0
    %306 = vdwg.mxu0
    %vm307 = vcmask 130048
    %v308 = vsel %vm307, %v299, -inf
    %309 = vmax.xlane.f32.xlu0 %v308
    %v310 = vpop.xlane.xlu0 %309
    %v311 = vsel %vm307, %v304, -inf
    %312 = vmax.xlane.f32.xlu0 %v311
    %v313 = vpop.xlane.xlu0 %312
    %v314 = vsub.f32 %v299, %v310
    %v315 = vsub.f32 %v304, %v313
    %v316 = vmul.f32 %v314, 1.442695
    %v317 = vpow.pop %v316
    %v318 = vmul.f32 %v315, 1.442695
    %v319 = vpow.pop %v318
    %322 = vrot.lane.b32.xlu0 %v164, 64
    %v323 = vpop.permute.xlu0 %322
    %324 = vrot.lane.b32.xlu0 %v169, 64
    %v325 = vpop.permute.xlu0 %324
    %v329 = vsel %vm307, %v317, 0
    %v332 = vsel %vm307, %v319, 0
    %334 = vmatprep.subr.mxu0 0.0
    %335 = vmatpush1.msra.mxu0 %v323
    %336 = vmatprep.subr.mxu0 0.0
    %337 = vmatpush1.msra.mxu0 %v325
    %338 = vmatprep.subr.mxu0 0.0
    %339 = vmatpush1.msra.mxu0 0.0
    %340 = vmatprep.subr.mxu0 0.0
    %341 = vmatpush1.msra.mxu0 0.0
    %342 = vmatprep.subr.mxu0 0.0
    %343 = vmatpush1.msra.mxu0 0.0
    %344 = vmatprep.subr.mxu0 0.0
    %345 = vmatpush1.msra.mxu0 0.0
    %346 = vmatprep.subr.mxu0 0.0
    %347 = vmatpush1.msra.mxu0 0.0
    %348 = vmatprep.subr.mxu0 0.0
    %349 = vmatpush1.msra.mxu0 0.0
    %350 = vmatprep.subr.mxu0 0.0
    %351 = vmatpush1.msra.mxu0 0.0
    %352 = vmatprep.subr.mxu0 0.0
    %353 = vmatpush1.msra.mxu0 0.0
    %354 = vmatprep.subr.mxu0 0.0
    %355 = vmatpush1.msra.mxu0 0.0
    %356 = vmatprep.subr.mxu0 0.0
    %357 = vmatpush1.msra.mxu0 0.0
    %358 = vmatprep.subr.mxu0 0.0
    %359 = vmatpush1.msra.mxu0 0.0
    %360 = vmatprep.subr.mxu0 0.0
    %361 = vmatpush1.msra.mxu0 0.0
    %362 = vmatprep.subr.mxu0 0.0
    %363 = vmatpush1.msra.mxu0 0.0
    %364 = vmatprep.subr.mxu0 0.0
    %365 = vmatpush1.msra.mxu0 0.0
    %366 = vmatprep.subr.mxu0 0.0
    %367 = vmatpush1.msra.mxu0 0.0
    %368 = vmatprep.subr.mxu0 0.0
    %369 = vmatpush1.msra.mxu0 0.0
    %370 = vmatprep.subr.mxu0 0.0
    %371 = vmatpush1.msra.mxu0 0.0
    %372 = vmatprep.subr.mxu0 0.0
    %373 = vmatpush1.msra.mxu0 0.0
    %374 = vmatprep.subr.mxu0 0.0
    %375 = vmatpush1.msra.mxu0 0.0
    %376 = vmatprep.subr.mxu0 0.0
    %377 = vmatpush1.msra.mxu0 0.0
    %378 = vmatprep.subr.mxu0 0.0
    %379 = vmatpush1.msra.mxu0 0.0
    %380 = vmatprep.subr.mxu0 0.0
    %381 = vmatpush1.msra.mxu0 0.0
    %382 = vmatprep.subr.mxu0 0.0
    %383 = vmatpush1.msra.mxu0 0.0
    %384 = vmatprep.subr.mxu0 0.0
    %385 = vmatpush1.msra.mxu0 0.0
    %386 = vmatprep.subr.mxu0 0.0
    %387 = vmatpush1.msra.mxu0 0.0
    %388 = vmatprep.subr.mxu0 0.0
    %389 = vmatpush1.msra.mxu0 0.0
    %390 = vmatprep.subr.mxu0 0.0
    %391 = vmatpush1.msra.mxu0 0.0
    %392 = vmatprep.subr.mxu0 0.0
    %393 = vmatpush1.msra.mxu0 0.0
    %394 = vmatprep.subr.mxu0 0.0
    %395 = vmatpush1.msra.mxu0 0.0
    %396 = vmatprep.subr.mxu0 0.0
    %397 = vmatpush1.msra.mxu0 0.0
    %398 = vmatprep.mubr.f32.mxu0 0.0
    %399 = vmatmul.mubr.f32.gmra.mrb[0].mxu0 %v329
    %v400 = vpop.f32.mrb[0].mxu0
    %v401 = vadd.f32 0.0, %v400
    %v402 = vpop.f32.mrb[0].mxu0
    %403 = vmatprep.mubr.f32.mxu0 0.0
    %404 = vmatmul.mubr.f32.gmra.mrb[0].mxu0 %v332
    %v405 = vpop.f32.mrb[0].mxu0
    %v406 = vadd.f32 0.0, %v405
    %v407 = vpop.f32.mrb[0].mxu0
    %408 = vdwg.mxu0
    %v409 = vsel %vm307, %v317, 0.0
    %410 = vadd.xlane.f32.xlu0 %v409
    %v411 = vpop.xlane.xlu0 %410
    %v412 = vsel %vm307, %v319, 0.0
    %413 = vadd.xlane.f32.xlu0 %v412
    %v414 = vpop.xlane.xlu0 %413
    %v415 = vrcp.pop %v411
    %v416 = vmul.f32 1.0, %v415
    %v417 = vrcp.pop %v414
    %v418 = vmul.f32 1.0, %v417
    %v419 = vmul.f32 %v401, %v416
    %v420 = vmul.f32 %v406, %v418
    %421 = vrot.lane.b32.xlu0 %v154, 120
    %v422 = vpop.permute.xlu0 %421
    %423 = vrot.lane.b32.xlu0 %v159, 120
    %v424 = vpop.permute.xlu0 %423
    %425 = vrot.lane.b32.xlu0 %v154, 88
    %v426 = vpop.permute.xlu0 %425
    %427 = vrot.lane.b32.xlu0 %v159, 88
    %v428 = vpop.permute.xlu0 %427
    %v429 = vsel %vm223, %v422, 0
    %v431 = vsel %vm223, %v424, 0
    %v433 = vsel %vm223, %v426, 0
    %v435 = vsel %vm223, %v428, 0
    %437 = vmatprep.subr.mxu0 0.0
    %438 = vmatpush1.xpose.msra.mxu0 %v433
    %439 = vmatprep.subr.mxu0 0.0
    %440 = vmatpush1.xpose.msra.mxu0 %v435
    %441 = vmatprep.subr.mxu0 0.0
    %442 = vmatpush1.xpose.msra.mxu0 0.0
    %443 = vmatprep.subr.mxu0 0.0
    %444 = vmatpush1.xpose.msra.mxu0 0.0
    %445 = vmatprep.subr.mxu0 0.0
    %446 = vmatpush1.xpose.msra.mxu0 0.0
    %447 = vmatprep.subr.mxu0 0.0
    %448 = vmatpush1.xpose.msra.mxu0 0.0
    %449 = vmatprep.subr.mxu0 0.0
    %450 = vmatpush1.xpose.msra.mxu0 0.0
    %451 = vmatprep.subr.mxu0 0.0
    %452 = vmatpush1.xpose.msra.mxu0 0.0
    %453 = vmatprep.subr.mxu0 0.0
    %454 = vmatpush1.xpose.msra.mxu0 0.0
    %455 = vmatprep.subr.mxu0 0.0
    %456 = vmatpush1.xpose.msra.mxu0 0.0
    %457 = vmatprep.subr.mxu0 0.0
    %458 = vmatpush1.xpose.msra.mxu0 0.0
    %459 = vmatprep.subr.mxu0 0.0
    %460 = vmatpush1.xpose.msra.mxu0 0.0
    %461 = vmatprep.subr.mxu0 0.0
    %462 = vmatpush1.xpose.msra.mxu0 0.0
    %463 = vmatprep.subr.mxu0 0.0
    %464 = vmatpush1.xpose.msra.mxu0 0.0
    %465 = vmatprep.subr.mxu0 0.0
    %466 = vmatpush1.xpose.msra.mxu0 0.0
    %467 = vmatprep.subr.mxu0 0.0
    %468 = vmatpush1.xpose.msra.mxu0 0.0
    %469 = vmatprep.subr.mxu0 0.0
    %470 = vmatpush1.xpose.msra.mxu0 0.0
    %471 = vmatprep.subr.mxu0 0.0
    %472 = vmatpush1.xpose.msra.mxu0 0.0
    %473 = vmatprep.subr.mxu0 0.0
    %474 = vmatpush1.xpose.msra.mxu0 0.0
    %475 = vmatprep.subr.mxu0 0.0
    %476 = vmatpush1.xpose.msra.mxu0 0.0
    %477 = vmatprep.subr.mxu0 0.0
    %478 = vmatpush1.xpose.msra.mxu0 0.0
    %479 = vmatprep.subr.mxu0 0.0
    %480 = vmatpush1.xpose.msra.mxu0 0.0
    %481 = vmatprep.subr.mxu0 0.0
    %482 = vmatpush1.xpose.msra.mxu0 0.0
    %483 = vmatprep.subr.mxu0 0.0
    %484 = vmatpush1.xpose.msra.mxu0 0.0
    %485 = vmatprep.subr.mxu0 0.0
    %486 = vmatpush1.xpose.msra.mxu0 0.0
    %487 = vmatprep.subr.mxu0 0.0
    %488 = vmatpush1.xpose.msra.mxu0 0.0
    %489 = vmatprep.subr.mxu0 0.0
    %490 = vmatpush1.xpose.msra.mxu0 0.0
    %491 = vmatprep.subr.mxu0 0.0
    %492 = vmatpush1.xpose.msra.mxu0 0.0
    %493 = vmatprep.subr.mxu0 0.0
    %494 = vmatpush1.xpose.msra.mxu0 0.0
    %495 = vmatprep.subr.mxu0 0.0
    %496 = vmatpush1.xpose.msra.mxu0 0.0
    %497 = vmatprep.subr.mxu0 0.0
    %498 = vmatpush1.xpose.msra.mxu0 0.0
    %499 = vmatprep.subr.mxu0 0.0
    %500 = vmatpush1.xpose.msra.mxu0 0.0
    %501 = vmatprep.mubr.f32.mxu0 0.0
    %502 = vmatmul.mubr.f32.gmra.mrb[0].mxu0 %v429
    %v503 = vpop.f32.mrb[0].mxu0
    %v504 = vadd.f32 %v215, %v503
    %v505 = vpop.f32.mrb[0].mxu0
    %506 = vmatprep.mubr.f32.mxu0 0.0
    %507 = vmatmul.mubr.f32.gmra.mrb[0].mxu0 %v431
    %v508 = vpop.f32.mrb[0].mxu0
    %v509 = vadd.f32 %v216, %v508
    %v510 = vpop.f32.mrb[0].mxu0
    %511 = vdwg.mxu0
    %v512 = vsel %vm307, %v504, -inf
    %513 = vmax.xlane.f32.xlu0 %v512
    %v514 = vpop.xlane.xlu0 %513
    %v515 = vsel %vm307, %v509, -inf
    %516 = vmax.xlane.f32.xlu0 %v515
    %v517 = vpop.xlane.xlu0 %516
    %v518 = vsub.f32 %v504, %v514
    %v519 = vsub.f32 %v509, %v517
    %v520 = vmul.f32 %v518, 1.442695
    %v521 = vpow.pop %v520
    %v522 = vmul.f32 %v519, 1.442695
    %v523 = vpow.pop %v522
    %524 = vrot.lane.b32.xlu0 %v164, 56
    %v525 = vpop.permute.xlu0 %524
    %526 = vrot.lane.b32.xlu0 %v169, 56
    %v527 = vpop.permute.xlu0 %526
    %v531 = vsel %vm307, %v521, 0
    %v534 = vsel %vm307, %v523, 0
    %536 = vmatprep.subr.mxu0 0.0
    %537 = vmatpush1.msra.mxu0 %v525
    %538 = vmatprep.subr.mxu0 0.0
    %539 = vmatpush1.msra.mxu0 %v527
    %540 = vmatprep.subr.mxu0 0.0
    %541 = vmatpush1.msra.mxu0 0.0
    %542 = vmatprep.subr.mxu0 0.0
    %543 = vmatpush1.msra.mxu0 0.0
    %544 = vmatprep.subr.mxu0 0.0
    %545 = vmatpush1.msra.mxu0 0.0
    %546 = vmatprep.subr.mxu0 0.0
    %547 = vmatpush1.msra.mxu0 0.0
    %548 = vmatprep.subr.mxu0 0.0
    %549 = vmatpush1.msra.mxu0 0.0
    %550 = vmatprep.subr.mxu0 0.0
    %551 = vmatpush1.msra.mxu0 0.0
    %552 = vmatprep.subr.mxu0 0.0
    %553 = vmatpush1.msra.mxu0 0.0
    %554 = vmatprep.subr.mxu0 0.0
    %555 = vmatpush1.msra.mxu0 0.0
    %556 = vmatprep.subr.mxu0 0.0
    %557 = vmatpush1.msra.mxu0 0.0
    %558 = vmatprep.subr.mxu0 0.0
    %559 = vmatpush1.msra.mxu0 0.0
    %560 = vmatprep.subr.mxu0 0.0
    %561 = vmatpush1.msra.mxu0 0.0
    %562 = vmatprep.subr.mxu0 0.0
    %563 = vmatpush1.msra.mxu0 0.0
    %564 = vmatprep.subr.mxu0 0.0
    %565 = vmatpush1.msra.mxu0 0.0
    %566 = vmatprep.subr.mxu0 0.0
    %567 = vmatpush1.msra.mxu0 0.0
    %568 = vmatprep.subr.mxu0 0.0
    %569 = vmatpush1.msra.mxu0 0.0
    %570 = vmatprep.subr.mxu0 0.0
    %571 = vmatpush1.msra.mxu0 0.0
    %572 = vmatprep.subr.mxu0 0.0
    %573 = vmatpush1.msra.mxu0 0.0
    %574 = vmatprep.subr.mxu0 0.0
    %575 = vmatpush1.msra.mxu0 0.0
    %576 = vmatprep.subr.mxu0 0.0
    %577 = vmatpush1.msra.mxu0 0.0
    %578 = vmatprep.subr.mxu0 0.0
    %579 = vmatpush1.msra.mxu0 0.0
    %580 = vmatprep.subr.mxu0 0.0
    %581 = vmatpush1.msra.mxu0 0.0
    %582 = vmatprep.subr.mxu0 0.0
    %583 = vmatpush1.msra.mxu0 0.0
    %584 = vmatprep.subr.mxu0 0.0
    %585 = vmatpush1.msra.mxu0 0.0
    %586 = vmatprep.subr.mxu0 0.0
    %587 = vmatpush1.msra.mxu0 0.0
    %588 = vmatprep.subr.mxu0 0.0
    %589 = vmatpush1.msra.mxu0 0.0
    %590 = vmatprep.subr.mxu0 0.0
    %591 = vmatpush1.msra.mxu0 0.0
    %592 = vmatprep.subr.mxu0 0.0
    %593 = vmatpush1.msra.mxu0 0.0
    %594 = vmatprep.subr.mxu0 0.0
    %595 = vmatpush1.msra.mxu0 0.0
    %596 = vmatprep.subr.mxu0 0.0
    %597 = vmatpush1.msra.mxu0 0.0
    %598 = vmatprep.subr.mxu0 0.0
    %599 = vmatpush1.msra.mxu0 0.0
    %600 = vmatprep.mubr.f32.mxu0 0.0
    %601 = vmatmul.mubr.f32.gmra.mrb[0].mxu0 %v531
    %v602 = vpop.f32.mrb[0].mxu0
    %v603 = vadd.f32 0.0, %v602
    %v604 = vpop.f32.mrb[0].mxu0
    %605 = vmatprep.mubr.f32.mxu0 0.0
    %606 = vmatmul.mubr.f32.gmra.mrb[0].mxu0 %v534
    %v607 = vpop.f32.mrb[0].mxu0
    %v608 = vadd.f32 0.0, %v607
    %v609 = vpop.f32.mrb[0].mxu0
    %610 = vdwg.mxu0
    %v611 = vsel %vm307, %v521, 0.0
    %612 = vadd.xlane.f32.xlu0 %v611
    %v613 = vpop.xlane.xlu0 %612
    %v614 = vsel %vm307, %v523, 0.0
    %615 = vadd.xlane.f32.xlu0 %v614
    %v616 = vpop.xlane.xlu0 %615
    %v617 = vrcp.pop %v613
    %v618 = vmul.f32 1.0, %v617
    %v619 = vrcp.pop %v616
    %v620 = vmul.f32 1.0, %v619
    %v621 = vmul.f32 %v603, %v618
    %v622 = vmul.f32 %v608, %v620
    %623 = vrot.lane.b32.xlu0 %v154, 112
    %v624 = vpop.permute.xlu0 %623
    %625 = vrot.lane.b32.xlu0 %v159, 112
    %v626 = vpop.permute.xlu0 %625
    %627 = vrot.lane.b32.xlu0 %v154, 80
    %v628 = vpop.permute.xlu0 %627
    %629 = vrot.lane.b32.xlu0 %v159, 80
    %v630 = vpop.permute.xlu0 %629
    %v631 = vsel %vm223, %v624, 0
    %v633 = vsel %vm223, %v626, 0
    %v635 = vsel %vm223, %v628, 0
    %v637 = vsel %vm223, %v630, 0
    %639 = vmatprep.subr.mxu0 0.0
    %640 = vmatpush1.xpose.msra.mxu0 %v635
    %641 = vmatprep.subr.mxu0 0.0
    %642 = vmatpush1.xpose.msra.mxu0 %v637
    %643 = vmatprep.subr.mxu0 0.0
    %644 = vmatpush1.xpose.msra.mxu0 0.0
    %645 = vmatprep.subr.mxu0 0.0
    %646 = vmatpush1.xpose.msra.mxu0 0.0
    %647 = vmatprep.subr.mxu0 0.0
    %648 = vmatpush1.xpose.msra.mxu0 0.0
    %649 = vmatprep.subr.mxu0 0.0
    %650 = vmatpush1.xpose.msra.mxu0 0.0
    %651 = vmatprep.subr.mxu0 0.0
    %652 = vmatpush1.xpose.msra.mxu0 0.0
    %653 = vmatprep.subr.mxu0 0.0
    %654 = vmatpush1.xpose.msra.mxu0 0.0
    %655 = vmatprep.subr.mxu0 0.0
    %656 = vmatpush1.xpose.msra.mxu0 0.0
    %657 = vmatprep.subr.mxu0 0.0
    %658 = vmatpush1.xpose.msra.mxu0 0.0
    %659 = vmatprep.subr.mxu0 0.0
    %660 = vmatpush1.xpose.msra.mxu0 0.0
    %661 = vmatprep.subr.mxu0 0.0
    %662 = vmatpush1.xpose.msra.mxu0 0.0
    %663 = vmatprep.subr.mxu0 0.0
    %664 = vmatpush1.xpose.msra.mxu0 0.0
    %665 = vmatprep.subr.mxu0 0.0
    %666 = vmatpush1.xpose.msra.mxu0 0.0
    %667 = vmatprep.subr.mxu0 0.0
    %668 = vmatpush1.xpose.msra.mxu0 0.0
    %669 = vmatprep.subr.mxu0 0.0
    %670 = vmatpush1.xpose.msra.mxu0 0.0
    %671 = vmatprep.subr.mxu0 0.0
    %672 = vmatpush1.xpose.msra.mxu0 0.0
    %673 = vmatprep.subr.mxu0 0.0
    %674 = vmatpush1.xpose.msra.mxu0 0.0
    %675 = vmatprep.subr.mxu0 0.0
    %676 = vmatpush1.xpose.msra.mxu0 0.0
    %677 = vmatprep.subr.mxu0 0.0
    %678 = vmatpush1.xpose.msra.mxu0 0.0
    %679 = vmatprep.subr.mxu0 0.0
    %680 = vmatpush1.xpose.msra.mxu0 0.0
    %681 = vmatprep.subr.mxu0 0.0
    %682 = vmatpush1.xpose.msra.mxu0 0.0
    %683 = vmatprep.subr.mxu0 0.0
    %684 = vmatpush1.xpose.msra.mxu0 0.0
    %685 = vmatprep.subr.mxu0 0.0
    %686 = vmatpush1.xpose.msra.mxu0 0.0
    %687 = vmatprep.subr.mxu0 0.0
    %688 = vmatpush1.xpose.msra.mxu0 0.0
    %689 = vmatprep.subr.mxu0 0.0
    %690 = vmatpush1.xpose.msra.mxu0 0.0
    %691 = vmatprep.subr.mxu0 0.0
    %692 = vmatpush1.xpose.msra.mxu0 0.0
    %693 = vmatprep.subr.mxu0 0.0
    %694 = vmatpush1.xpose.msra.mxu0 0.0
    %695 = vmatprep.subr.mxu0 0.0
    %696 = vmatpush1.xpose.msra.mxu0 0.0
    %697 = vmatprep.subr.mxu0 0.0
    %698 = vmatpush1.xpose.msra.mxu0 0.0
    %699 = vmatprep.subr.mxu0 0.0
    %700 = vmatpush1.xpose.msra.mxu0 0.0
    %701 = vmatprep.subr.mxu0 0.0
    %702 = vmatpush1.xpose.msra.mxu0 0.0
    %703 = vmatprep.mubr.f32.mxu0 0.0
    %704 = vmatmul.mubr.f32.gmra.mrb[0].mxu0 %v631
    %v705 = vpop.f32.mrb[0].mxu0
    %v706 = vadd.f32 %v215, %v705
    %v707 = vpop.f32.mrb[0].mxu0
    %708 = vmatprep.mubr.f32.mxu0 0.0
    %709 = vmatmul.mubr.f32.gmra.mrb[0].mxu0 %v633
    %v710 = vpop.f32.mrb[0].mxu0
    %v711 = vadd.f32 %v216, %v710
    %v712 = vpop.f32.mrb[0].mxu0
    %713 = vdwg.mxu0
    %v714 = vsel %vm307, %v706, -inf
    %715 = vmax.xlane.f32.xlu0 %v714
    %v716 = vpop.xlane.xlu0 %715
    %v717 = vsel %vm307, %v711, -inf
    %718 = vmax.xlane.f32.xlu0 %v717
    %v719 = vpop.xlane.xlu0 %718
    %v720 = vsub.f32 %v706, %v716
    %v721 = vsub.f32 %v711, %v719
    %v722 = vmul.f32 %v720, 1.442695
    %v723 = vpow.pop %v722
    %v724 = vmul.f32 %v721, 1.442695
    %v725 = vpow.pop %v724
    %726 = vrot.lane.b32.xlu0 %v164, 48
    %v727 = vpop.permute.xlu0 %726
    %728 = vrot.lane.b32.xlu0 %v169, 48
    %v729 = vpop.permute.xlu0 %728
    %v733 = vsel %vm307, %v723, 0
    %v736 = vsel %vm307, %v725, 0
    %738 = vmatprep.subr.mxu0 0.0
    %739 = vmatpush1.msra.mxu0 %v727
    %740 = vmatprep.subr.mxu0 0.0
    %741 = vmatpush1.msra.mxu0 %v729
    %742 = vmatprep.subr.mxu0 0.0
    %743 = vmatpush1.msra.mxu0 0.0
    %744 = vmatprep.subr.mxu0 0.0
    %745 = vmatpush1.msra.mxu0 0.0
    %746 = vmatprep.subr.mxu0 0.0
    %747 = vmatpush1.msra.mxu0 0.0
    %748 = vmatprep.subr.mxu0 0.0
    %749 = vmatpush1.msra.mxu0 0.0
    %750 = vmatprep.subr.mxu0 0.0
    %751 = vmatpush1.msra.mxu0 0.0
    %752 = vmatprep.subr.mxu0 0.0
    %753 = vmatpush1.msra.mxu0 0.0
    %754 = vmatprep.subr.mxu0 0.0
    %755 = vmatpush1.msra.mxu0 0.0
    %756 = vmatprep.subr.mxu0 0.0
    %757 = vmatpush1.msra.mxu0 0.0
    %758 = vmatprep.subr.mxu0 0.0
    %759 = vmatpush1.msra.mxu0 0.0
    %760 = vmatprep.subr.mxu0 0.0
    %761 = vmatpush1.msra.mxu0 0.0
    %762 = vmatprep.subr.mxu0 0.0
    %763 = vmatpush1.msra.mxu0 0.0
    %764 = vmatprep.subr.mxu0 0.0
    %765 = vmatpush1.msra.mxu0 0.0
    %766 = vmatprep.subr.mxu0 0.0
    %767 = vmatpush1.msra.mxu0 0.0
    %768 = vmatprep.subr.mxu0 0.0
    %769 = vmatpush1.msra.mxu0 0.0
    %770 = vmatprep.subr.mxu0 0.0
    %771 = vmatpush1.msra.mxu0 0.0
    %772 = vmatprep.subr.mxu0 0.0
    %773 = vmatpush1.msra.mxu0 0.0
    %774 = vmatprep.subr.mxu0 0.0
    %775 = vmatpush1.msra.mxu0 0.0
    %776 = vmatprep.subr.mxu0 0.0
    %777 = vmatpush1.msra.mxu0 0.0
    %778 = vmatprep.subr.mxu0 0.0
    %779 = vmatpush1.msra.mxu0 0.0
    %780 = vmatprep.subr.mxu0 0.0
    %781 = vmatpush1.msra.mxu0 0.0
    %782 = vmatprep.subr.mxu0 0.0
    %783 = vmatpush1.msra.mxu0 0.0
    %784 = vmatprep.subr.mxu0 0.0
    %785 = vmatpush1.msra.mxu0 0.0
    %786 = vmatprep.subr.mxu0 0.0
    %787 = vmatpush1.msra.mxu0 0.0
    %788 = vmatprep.subr.mxu0 0.0
    %789 = vmatpush1.msra.mxu0 0.0
    %790 = vmatprep.subr.mxu0 0.0
    %791 = vmatpush1.msra.mxu0 0.0
    %792 = vmatprep.subr.mxu0 0.0
    %793 = vmatpush1.msra.mxu0 0.0
    %794 = vmatprep.subr.mxu0 0.0
    %795 = vmatpush1.msra.mxu0 0.0
    %796 = vmatprep.subr.mxu0 0.0
    %797 = vmatpush1.msra.mxu0 0.0
    %798 = vmatprep.subr.mxu0 0.0
    %799 = vmatpush1.msra.mxu0 0.0
    %800 = vmatprep.subr.mxu0 0.0
    %801 = vmatpush1.msra.mxu0 0.0
    %802 = vmatprep.mubr.f32.mxu0 0.0
    %803 = vmatmul.mubr.f32.gmra.mrb[0].mxu0 %v733
    %v804 = vpop.f32.mrb[0].mxu0
    %v805 = vadd.f32 0.0, %v804
    %v806 = vpop.f32.mrb[0].mxu0
    %807 = vmatprep.mubr.f32.mxu0 0.0
    %808 = vmatmul.mubr.f32.gmra.mrb[0].mxu0 %v736
    %v809 = vpop.f32.mrb[0].mxu0
    %v810 = vadd.f32 0.0, %v809
    %v811 = vpop.f32.mrb[0].mxu0
    %812 = vdwg.mxu0
    %v813 = vsel %vm307, %v723, 0.0
    %814 = vadd.xlane.f32.xlu0 %v813
    %v815 = vpop.xlane.xlu0 %814
    %v816 = vsel %vm307, %v725, 0.0
    %817 = vadd.xlane.f32.xlu0 %v816
    %v818 = vpop.xlane.xlu0 %817
    %v819 = vrcp.pop %v815
    %v820 = vmul.f32 1.0, %v819
    %v821 = vrcp.pop %v818
    %v822 = vmul.f32 1.0, %v821
    %v823 = vmul.f32 %v805, %v820
    %v824 = vmul.f32 %v810, %v822
    %825 = vrot.lane.b32.xlu0 %v154, 104
    %v826 = vpop.permute.xlu0 %825
    %827 = vrot.lane.b32.xlu0 %v159, 104
    %v828 = vpop.permute.xlu0 %827
    %829 = vrot.lane.b32.xlu0 %v154, 72
    %v830 = vpop.permute.xlu0 %829
    %831 = vrot.lane.b32.xlu0 %v159, 72
    %v832 = vpop.permute.xlu0 %831
    %v833 = vsel %vm223, %v826, 0
    %v835 = vsel %vm223, %v828, 0
    %v837 = vsel %vm223, %v830, 0
    %v839 = vsel %vm223, %v832, 0
    %841 = vmatprep.subr.mxu0 0.0
    %842 = vmatpush1.xpose.msra.mxu0 %v837
    %843 = vmatprep.subr.mxu0 0.0
    %844 = vmatpush1.xpose.msra.mxu0 %v839
    %845 = vmatprep.subr.mxu0 0.0
    %846 = vmatpush1.xpose.msra.mxu0 0.0
    %847 = vmatprep.subr.mxu0 0.0
    %848 = vmatpush1.xpose.msra.mxu0 0.0
    %849 = vmatprep.subr.mxu0 0.0
    %850 = vmatpush1.xpose.msra.mxu0 0.0
    %851 = vmatprep.subr.mxu0 0.0
    %852 = vmatpush1.xpose.msra.mxu0 0.0
    %853 = vmatprep.subr.mxu0 0.0
    %854 = vmatpush1.xpose.msra.mxu0 0.0
    %855 = vmatprep.subr.mxu0 0.0
    %856 = vmatpush1.xpose.msra.mxu0 0.0
    %857 = vmatprep.subr.mxu0 0.0
    %858 = vmatpush1.xpose.msra.mxu0 0.0
    %859 = vmatprep.subr.mxu0 0.0
    %860 = vmatpush1.xpose.msra.mxu0 0.0
    %861 = vmatprep.subr.mxu0 0.0
    %862 = vmatpush1.xpose.msra.mxu0 0.0
    %863 = vmatprep.subr.mxu0 0.0
    %864 = vmatpush1.xpose.msra.mxu0 0.0
    %865 = vmatprep.subr.mxu0 0.0
    %866 = vmatpush1.xpose.msra.mxu0 0.0
    %867 = vmatprep.subr.mxu0 0.0
    %868 = vmatpush1.xpose.msra.mxu0 0.0
    %869 = vmatprep.subr.mxu0 0.0
    %870 = vmatpush1.xpose.msra.mxu0 0.0
    %871 = vmatprep.subr.mxu0 0.0
    %872 = vmatpush1.xpose.msra.mxu0 0.0
    %873 = vmatprep.subr.mxu0 0.0
    %874 = vmatpush1.xpose.msra.mxu0 0.0
    %875 = vmatprep.subr.mxu0 0.0
    %876 = vmatpush1.xpose.msra.mxu0 0.0
    %877 = vmatprep.subr.mxu0 0.0
    %878 = vmatpush1.xpose.msra.mxu0 0.0
    %879 = vmatprep.subr.mxu0 0.0
    %880 = vmatpush1.xpose.msra.mxu0 0.0
    %881 = vmatprep.subr.mxu0 0.0
    %882 = vmatpush1.xpose.msra.mxu0 0.0
    %883 = vmatprep.subr.mxu0 0.0
    %884 = vmatpush1.xpose.msra.mxu0 0.0
    %885 = vmatprep.subr.mxu0 0.0
    %886 = vmatpush1.xpose.msra.mxu0 0.0
    %887 = vmatprep.subr.mxu0 0.0
    %888 = vmatpush1.xpose.msra.mxu0 0.0
    %889 = vmatprep.subr.mxu0 0.0
    %890 = vmatpush1.xpose.msra.mxu0 0.0
    %891 = vmatprep.subr.mxu0 0.0
    %892 = vmatpush1.xpose.msra.mxu0 0.0
    %893 = vmatprep.subr.mxu0 0.0
    %894 = vmatpush1.xpose.msra.mxu0 0.0
    %895 = vmatprep.subr.mxu0 0.0
    %896 = vmatpush1.xpose.msra.mxu0 0.0
    %897 = vmatprep.subr.mxu0 0.0
    %898 = vmatpush1.xpose.msra.mxu0 0.0
    %899 = vmatprep.subr.mxu0 0.0
    %900 = vmatpush1.xpose.msra.mxu0 0.0
    %901 = vmatprep.subr.mxu0 0.0
    %902 = vmatpush1.xpose.msra.mxu0 0.0
    %903 = vmatprep.subr.mxu0 0.0
    %904 = vmatpush1.xpose.msra.mxu0 0.0
    %905 = vmatprep.mubr.f32.mxu0 0.0
    %906 = vmatmul.mubr.f32.gmra.mrb[0].mxu0 %v833
    %v907 = vpop.f32.mrb[0].mxu0
    %v908 = vadd.f32 %v215, %v907
    %v909 = vpop.f32.mrb[0].mxu0
    %910 = vmatprep.mubr.f32.mxu0 0.0
    %911 = vmatmul.mubr.f32.gmra.mrb[0].mxu0 %v835
    %v912 = vpop.f32.mrb[0].mxu0
    %v913 = vadd.f32 %v216, %v912
    %v914 = vpop.f32.mrb[0].mxu0
    %915 = vdwg.mxu0
    %v916 = vsel %vm307, %v908, -inf
    %917 = vmax.xlane.f32.xlu0 %v916
    %v918 = vpop.xlane.xlu0 %917
    %v919 = vsel %vm307, %v913, -inf
    %920 = vmax.xlane.f32.xlu0 %v919
    %v921 = vpop.xlane.xlu0 %920
    %v922 = vsub.f32 %v908, %v918
    %v923 = vsub.f32 %v913, %v921
    %v924 = vmul.f32 %v922, 1.442695
    %v925 = vpow.pop %v924
    %v926 = vmul.f32 %v923, 1.442695
    %v927 = vpow.pop %v926
    %928 = vrot.lane.b32.xlu0 %v164, 40
    %v929 = vpop.permute.xlu0 %928
    %930 = vrot.lane.b32.xlu0 %v169, 40
    %v931 = vpop.permute.xlu0 %930
    %v935 = vsel %vm307, %v925, 0
    %v938 = vsel %vm307, %v927, 0
    %940 = vmatprep.subr.mxu0 0.0
    %941 = vmatpush1.msra.mxu0 %v929
    %942 = vmatprep.subr.mxu0 0.0
    %943 = vmatpush1.msra.mxu0 %v931
    %944 = vmatprep.subr.mxu0 0.0
    %945 = vmatpush1.msra.mxu0 0.0
    %946 = vmatprep.subr.mxu0 0.0
    %947 = vmatpush1.msra.mxu0 0.0
    %948 = vmatprep.subr.mxu0 0.0
    %949 = vmatpush1.msra.mxu0 0.0
    %950 = vmatprep.subr.mxu0 0.0
    %951 = vmatpush1.msra.mxu0 0.0
    %952 = vmatprep.subr.mxu0 0.0
    %953 = vmatpush1.msra.mxu0 0.0
    %954 = vmatprep.subr.mxu0 0.0
    %955 = vmatpush1.msra.mxu0 0.0
    %956 = vmatprep.subr.mxu0 0.0
    %957 = vmatpush1.msra.mxu0 0.0
    %958 = vmatprep.subr.mxu0 0.0
    %959 = vmatpush1.msra.mxu0 0.0
    %960 = vmatprep.subr.mxu0 0.0
    %961 = vmatpush1.msra.mxu0 0.0
    %962 = vmatprep.subr.mxu0 0.0
    %963 = vmatpush1.msra.mxu0 0.0
    %964 = vmatprep.subr.mxu0 0.0
    %965 = vmatpush1.msra.mxu0 0.0
    %966 = vmatprep.subr.mxu0 0.0
    %967 = vmatpush1.msra.mxu0 0.0
    %968 = vmatprep.subr.mxu0 0.0
    %969 = vmatpush1.msra.mxu0 0.0
    %970 = vmatprep.subr.mxu0 0.0
    %971 = vmatpush1.msra.mxu0 0.0
    %972 = vmatprep.subr.mxu0 0.0
    %973 = vmatpush1.msra.mxu0 0.0
    %974 = vmatprep.subr.mxu0 0.0
    %975 = vmatpush1.msra.mxu0 0.0
    %976 = vmatprep.subr.mxu0 0.0
    %977 = vmatpush1.msra.mxu0 0.0
    %978 = vmatprep.subr.mxu0 0.0
    %979 = vmatpush1.msra.mxu0 0.0
    %980 = vmatprep.subr.mxu0 0.0
    %981 = vmatpush1.msra.mxu0 0.0
    %982 = vmatprep.subr.mxu0 0.0
    %983 = vmatpush1.msra.mxu0 0.0
    %984 = vmatprep.subr.mxu0 0.0
    %985 = vmatpush1.msra.mxu0 0.0
    %986 = vmatprep.subr.mxu0 0.0
    %987 = vmatpush1.msra.mxu0 0.0
    %988 = vmatprep.subr.mxu0 0.0
    %989 = vmatpush1.msra.mxu0 0.0
    %990 = vmatprep.subr.mxu0 0.0
    %991 = vmatpush1.msra.mxu0 0.0
    %992 = vmatprep.subr.mxu0 0.0
    %993 = vmatpush1.msra.mxu0 0.0
    %994 = vmatprep.subr.mxu0 0.0
    %995 = vmatpush1.msra.mxu0 0.0
    %996 = vmatprep.subr.mxu0 0.0
    %997 = vmatpush1.msra.mxu0 0.0
    %998 = vmatprep.subr.mxu0 0.0
    %999 = vmatpush1.msra.mxu0 0.0
    %1000 = vmatprep.subr.mxu0 0.0
    %1001 = vmatpush1.msra.mxu0 0.0
    %1002 = vmatprep.subr.mxu0 0.0
    %1003 = vmatpush1.msra.mxu0 0.0
    %1004 = vmatprep.mubr.f32.mxu0 0.0
    %1005 = vmatmul.mubr.f32.gmra.mrb[0].mxu0 %v935
    %v1006 = vpop.f32.mrb[0].mxu0
    %v1007 = vadd.f32 0.0, %v1006
    %v1008 = vpop.f32.mrb[0].mxu0
    %1009 = vmatprep.mubr.f32.mxu0 0.0
    %1010 = vmatmul.mubr.f32.gmra.mrb[0].mxu0 %v938
    %v1011 = vpop.f32.mrb[0].mxu0
    %v1012 = vadd.f32 0.0, %v1011
    %v1013 = vpop.f32.mrb[0].mxu0
    %1014 = vdwg.mxu0
    %v1015 = vsel %vm307, %v925, 0.0
    %1016 = vadd.xlane.f32.xlu0 %v1015
    %v1017 = vpop.xlane.xlu0 %1016
    %v1018 = vsel %vm307, %v927, 0.0
    %1019 = vadd.xlane.f32.xlu0 %v1018
    %v1020 = vpop.xlane.xlu0 %1019
    %v1021 = vrcp.pop %v1017
    %v1022 = vmul.f32 1.0, %v1021
    %v1023 = vrcp.pop %v1020
    %v1024 = vmul.f32 1.0, %v1023
    %v1025 = vmul.f32 %v1007, %v1022
    %v1026 = vmul.f32 %v1012, %v1024
    %1029 = vrot.lane.b32.xlu0 %v621, 8
    %v1030 = vpop.permute.xlu0 %1029
    %1031 = vrot.lane.b32.xlu0 %v622, 8
    %v1032 = vpop.permute.xlu0 %1031
    %1037 = vrot.lane.b32.xlu0 %v823, 16
    %v1038 = vpop.permute.xlu0 %1037
    %1039 = vrot.lane.b32.xlu0 %v824, 16
    %v1040 = vpop.permute.xlu0 %1039
    %1045 = vrot.lane.b32.xlu0 %v1025, 24
    %v1046 = vpop.permute.xlu0 %1045
    %1047 = vrot.lane.b32.xlu0 %v1026, 24
    %v1048 = vpop.permute.xlu0 %1047
    %v1051 = vsel %vm223, %v419, %v1030
    %v1052 = vsel %vm223, %v420, %v1032
    %v1053 = vsel %vm307, %v1051, %v1038
    %v1054 = vsel %vm307, %v1052, %v1040
    %vm1055 = vcmask 195584
    %v1056 = vsel %vm1055, %v1053, %v1046
    %v1057 = vsel %vm1055, %v1054, %v1048
    %1062 = vrot.lane.b32.xlu0 %v65, 32
    %v1063 = vpop.permute.xlu0 %1062
    %1064 = vrot.lane.b32.xlu0 %v66, 32
    %v1065 = vpop.permute.xlu0 %1064
    %1066 = vrot.lane.b32.xlu0 %v67, 32
    %v1067 = vpop.permute.xlu0 %1066
    %1068 = vrot.lane.b32.xlu0 %v68, 32
    %v1069 = vpop.permute.xlu0 %1068
    %v1075 = vsel %vm74, %v1056, 0
    %v1078 = vsel %vm74, %v1057, 0
    %1080 = vmatprep.subr.mxu0 0.0
    %1081 = vmatpush1.msra.mxu0 %v1063
    %1082 = vmatprep.subr.mxu0 0.0
    %1083 = vmatpush1.msra.mxu0 %v1065
    %1084 = vmatprep.subr.mxu0 0.0
    %1085 = vmatpush1.msra.mxu0 %v1067
    %1086 = vmatprep.subr.mxu0 0.0
    %1087 = vmatpush1.msra.mxu0 %v1069
    %1088 = vmatprep.subr.mxu0 0.0
    %1089 = vmatpush1.msra.mxu0 0.0
    %1090 = vmatprep.subr.mxu0 0.0
    %1091 = vmatpush1.msra.mxu0 0.0
    %1092 = vmatprep.subr.mxu0 0.0
    %1093 = vmatpush1.msra.mxu0 0.0
    %1094 = vmatprep.subr.mxu0 0.0
    %1095 = vmatpush1.msra.mxu0 0.0
    %1096 = vmatprep.subr.mxu0 0.0
    %1097 = vmatpush1.msra.mxu0 0.0
    %1098 = vmatprep.subr.mxu0 0.0
    %1099 = vmatpush1.msra.mxu0 0.0
    %1100 = vmatprep.subr.mxu0 0.0
    %1101 = vmatpush1.msra.mxu0 0.0
    %1102 = vmatprep.subr.mxu0 0.0
    %1103 = vmatpush1.msra.mxu0 0.0
    %1104 = vmatprep.subr.mxu0 0.0
    %1105 = vmatpush1.msra.mxu0 0.0
    %1106 = vmatprep.subr.mxu0 0.0
    %1107 = vmatpush1.msra.mxu0 0.0
    %1108 = vmatprep.subr.mxu0 0.0
    %1109 = vmatpush1.msra.mxu0 0.0
    %1110 = vmatprep.subr.mxu0 0.0
    %1111 = vmatpush1.msra.mxu0 0.0
    %1112 = vmatprep.subr.mxu0 0.0
    %1113 = vmatpush1.msra.mxu0 0.0
    %1114 = vmatprep.subr.mxu0 0.0
    %1115 = vmatpush1.msra.mxu0 0.0
    %1116 = vmatprep.subr.mxu0 0.0
    %1117 = vmatpush1.msra.mxu0 0.0
    %1118 = vmatprep.subr.mxu0 0.0
    %1119 = vmatpush1.msra.mxu0 0.0
    %1120 = vmatprep.subr.mxu0 0.0
    %1121 = vmatpush1.msra.mxu0 0.0
    %1122 = vmatprep.subr.mxu0 0.0
    %1123 = vmatpush1.msra.mxu0 0.0
    %1124 = vmatprep.subr.mxu0 0.0
    %1125 = vmatpush1.msra.mxu0 0.0
    %1126 = vmatprep.subr.mxu0 0.0
    %1127 = vmatpush1.msra.mxu0 0.0
    %1128 = vmatprep.subr.mxu0 0.0
    %1129 = vmatpush1.msra.mxu0 0.0
    %1130 = vmatprep.subr.mxu0 0.0
    %1131 = vmatpush1.msra.mxu0 0.0
    %1132 = vmatprep.subr.mxu0 0.0
    %1133 = vmatpush1.msra.mxu0 0.0
    %1134 = vmatprep.subr.mxu0 0.0
    %1135 = vmatpush1.msra.mxu0 0.0
    %1136 = vmatprep.subr.mxu0 0.0
    %1137 = vmatpush1.msra.mxu0 0.0
    %1138 = vmatprep.subr.mxu0 0.0
    %1139 = vmatpush1.msra.mxu0 0.0
    %1140 = vmatprep.subr.mxu0 0.0
    %1141 = vmatpush1.msra.mxu0 0.0
    %1142 = vmatprep.subr.mxu0 0.0
    %1143 = vmatpush1.msra.mxu0 0.0
    %1144 = vmatprep.mubr.f32.mxu0 0.0
    %1145 = vmatmul.mubr.f32.gmra.mrb[0].mxu0 %v1075
    %v1146 = vpop.f32.mrb[0].mxu0
    %v1147 = vadd.f32 0.0, %v1146
    %v1148 = vpop.f32.mrb[0].mxu0
    %1149 = vmatprep.mubr.f32.mxu0 0.0
    %1150 = vmatmul.mubr.f32.gmra.mrb[0].mxu0 %v1078
    %v1151 = vpop.f32.mrb[0].mxu0
    %v1152 = vadd.f32 0.0, %v1151
    %v1153 = vpop.f32.mrb[0].mxu0
    %1154 = vdwg.mxu0
    %v1155 = vadd.f32 %v59, %v1147
    %v1156 = vadd.f32 %v60, %v1152
    %v1157 = vlaneseq
    %v1158 = vshrl.u32 %v1157, 7
    %v1159 = vsub.s32 1, %v1158
    %v1160 = vrot.slane %v69, %v1159
    %v1161 = vadd.f32 %v1155, %v1160
    %v1162 = vadd.f32 %v1156, %v1160
    %v1163 = vsel %vm74, %v1161, 0.0
    %1164 = vadd.xlane.f32.xlu0 %v1163
    %v1165 = vpop.xlane.xlu0 %1164
    %v1166 = vsel %vm74, %v1162, 0.0
    %1167 = vadd.xlane.f32.xlu0 %v1166
    %v1168 = vpop.xlane.xlu0 %1167
    %v1169 = vrcp.pop 32.0
    %v1170 = vmul.f32 %v1165, %v1169
    %v1171 = vmul.f32 %v1168, %v1169
    %v1172 = vsub.f32 %v1161, %v1170
    %v1173 = vsub.f32 %v1162, %v1171
    %v1174 = vmul.f32 %v1172, %v1172
    %v1175 = vmul.f32 %v1173, %v1173
    %v1176 = vsel %vm74, %v1174, 0.0
    %1177 = vadd.xlane.f32.xlu0 %v1176
    %v1178 = vpop.xlane.xlu0 %1177
    %v1179 = vsel %vm74, %v1175, 0.0
    %1180 = vadd.xlane.f32.xlu0 %v1179
    %v1181 = vpop.xlane.xlu0 %1180
    %v1182 = vmul.f32 %v1178, %v1169
    %v1183 = vmul.f32 %v1181, %v1169
    %v1184 = vadd.f32 %v1182, 1e-05
    %v1185 = vadd.f32 %v1183, 1e-05
    %v1186 = vrsqrt.pop %v1184
    %v1187 = vrsqrt.pop %v1185
    %v1188 = vmul.f32 %v1172, %v1186
    %v1189 = vmul.f32 %v1173, %v1187
    %v1190 = vlaneseq
    %v1191 = vshrl.u32 %v1190, 7
    %v1192 = vsub.s32 2, %v1191
    %v1193 = vrot.slane %v69, %v1192
    %v1194 = vmul.f32 %v1188, %v1193
    %v1195 = vmul.f32 %v1189, %v1193
    %v1196 = vlaneseq
    %v1197 = vshrl.u32 %v1196, 7
    %v1198 = vsub.s32 3, %v1197
    %v1199 = vrot.slane %v69, %v1198
    %v1200 = vadd.f32 %v1194, %v1199
    %v1201 = vadd.f32 %v1195, %v1199
    %1202 = vst.msk [vmem:[#allocation8] sm:$0xff] %vm74, %v1200
    %1203 = vst.msk [vmem:[#allocation8 + $0x8] sm:$0xff] %vm74, %v1201
    // Predicated region
    $region30: #{tpu_custom_call.1} parent=1 // pred_check
      _
    $region31: #{tpu_custom_call.1} parent=1 // pred_check_branch
      %1205 = sbr.rel (0) target = $region33
    $region32: #{tpu_custom_call.1} parent=1 // pred_region
      %s1207 = ssub.s32 256, 256
      %1208 = vsyncadd [#allocation4], %s1207
      %s1209 = sshll.u32 [#allocation8], 4
      %s1210 = int_to_ptr.vmem [resolvable:$true] %s1209
      %1215 = dma.vmem_to_hbm [thread:$0]  %s1210, 256, %s4, [#allocation4], 128, 128, 8
    $region33: #{tpu_custom_call.1} parent=1 // pred_fallthru
      _
    // Predicated region
    $region34: #{tpu_custom_call.1} parent=1 // pred_check
      _
    $region35: #{tpu_custom_call.1} parent=1 // pred_check_branch
      %1217 = sbr.rel (0) target = $region37
    $region36: #{tpu_custom_call.1} parent=1 // pred_region
      %1218 = dma.done [#allocation4], 256
    $region37: #{tpu_custom_call.1} parent=1 // pred_fallthru
      _
    %1219 = vsyncpa [#allocation3], 1
    %1220 = vsyncpa [#allocation6], 1
    %1221 = vsyncpa [#allocation4], 1

</llo_original>
